<compile_context>
chip_gen: v6e
topology: v6e:2x2x1
jax: 0.10.0
libtpu: 0.0.40
codegen_flags: <defaults>
</compile_context>

<pallas_src>
import jax
import jax.numpy as jnp
from jax.experimental import pallas as pl
from jax.experimental.pallas import tpu as pltpu


def _round_up(x: int, m: int) -> int:
    return ((x + m - 1) // m) * m


def _attention_kernel(x_ref, w_ref, o_ref):
    # x_ref: (BBLK, T, H)  block of batch rows, native input dtype
    # w_ref: (1, H)        attention weight row (shared across the grid)
    # o_ref: (BBLK, H)     context output block
    h = x_ref.shape[-1]
    w = w_ref[...].reshape(1, 1, h).astype(x_ref.dtype)            # (1, 1, H)

    # scores kept (BBLK, T, 1): T stays on sublanes through the whole softmax,
    # avoiding lane<->sublane relayouts of the score tensor.
    scores = jnp.sum(x_ref[...] * w, axis=-1, keepdims=True,
                     dtype=jnp.float32)                            # (BBLK, T, 1)

    m = jnp.max(scores, axis=1, keepdims=True)                     # (BBLK, 1, 1)
    e = jnp.exp(scores - m)                                        # (BBLK, T, 1) f32
    denom = jnp.sum(e, axis=1, keepdims=True)                      # (BBLK, 1, 1)

    # Unnormalized context: f32 softmax weights, f32 accumulation.
    # x_ref is re-read here (VMEM vld is cheap) rather than reusing a long-lived value.
    ctx = jnp.sum(x_ref[...].astype(jnp.float32) * e, axis=1)      # (BBLK, H) f32

    inv = 1.0 / denom[:, 0, :]                                     # (BBLK, 1) exact, tiny
    o_ref[...] = (ctx * inv).astype(o_ref.dtype)


def _vmem_capacity_bytes() -> int:
    try:
        cap = int(pltpu.get_tpu_info().vmem_capacity_bytes)
        if cap > 0:
            return cap
    except Exception:
        pass
    return 64 * 1024 * 1024  # conservative fallback (v7x per-TensorCore)


def _pick_block_b(B: int, T: int, H: int, itemsize: int,
                  vmem_cap: int, vmem_limit_bytes: int) -> int:
    per_row_in = T * H * itemsize
    per_row_out = H * itemsize
    # Generation-aware per-input-buffer DMA budget (the pipeline double-buffers it):
    # ~21 MiB on 128 MiB parts (v5e/v6e), ~10 MiB on the 64 MiB/TC part (v7x).
    buf_budget = max(4 << 20, vmem_cap // 6)
    cand = buf_budget // max(per_row_in, 1)
    # Hard cap: 2x input + 2x output double buffers (+ slack) must fit the VMEM limit.
    cap = (vmem_limit_bytes - (2 << 20)) // max(2 * (per_row_in + per_row_out), 1)
    cand = max(1, min(cand, cap))

    if cand >= B:
        return B                      # single full-extent block (always layout-valid)
    block_b = max(8, (cand // 8) * 8)  # sublane-dense output blocks
    if block_b >= B:
        return B
    if B >= 32:
        # Prefer the largest block giving an even count of >= 4 grid steps so the
        # "parallel" batch axis shards evenly across v7x's two TensorCores.
        for c in range(block_b, 7, -8):
            steps = pl.cdiv(B, c)
            if steps >= 4 and steps % 2 == 0:
                return c
    return block_b


def attention_layer(lstm_output: jax.Array, attn_weight: jax.Array,
                    *, block_b: int | None = None,
                    vmem_limit_bytes: int | None = None) -> jax.Array:
    """
    lstm_output : (B, T, H)
    attn_weight : (1, H)  -- matches nn.Linear(hidden_size, 1, bias=False).weight
    returns     : (B, H)  context vector
    """
    B, T, H = lstm_output.shape
    dtype = lstm_output.dtype
    itemsize = jnp.dtype(dtype).itemsize

    vmem_cap = _vmem_capacity_bytes()
    if vmem_limit_bytes is None:
        # ~96 MiB on 128 MiB parts (v5e/v6e), ~48 MiB on the 64 MiB/TC part (v7x).
        vmem_limit_bytes = min(vmem_cap * 3 // 4, 96 * 1024 * 1024)
    if block_b is None:
        block_b = _pick_block_b(B, T, H, itemsize, vmem_cap, vmem_limit_bytes)
    block_b = max(1, int(block_b))

    w = attn_weight.reshape(1, H).astype(dtype)   # tiny; no input padding anywhere

    cost = pl.CostEstimate(
        flops=4 * B * T * H,                      # dot-scores pass + weighted-sum pass
        transcendentals=B * T,                    # exp
        bytes_accessed=B * T * H * itemsize + H * itemsize + B * H * itemsize,
    )

    out = pl.pallas_call(
        _attention_kernel,
        out_shape=jax.ShapeDtypeStruct((B, H), dtype),
        grid_spec=pltpu.PrefetchScalarGridSpec(
            num_scalar_prefetch=0,
            grid=(pl.cdiv(B, block_b),),
            in_specs=[
                pl.BlockSpec((block_b, T, H), lambda b: (b, 0, 0)),  # batch block, full T/H
                pl.BlockSpec((1, H), lambda b: (0, 0)),              # shared weight row
            ],
            out_specs=pl.BlockSpec((block_b, H), lambda b: (b, 0)),
        ),
        compiler_params=pltpu.CompilerParams(
            dimension_semantics=("parallel",),
            vmem_limit_bytes=int(vmem_limit_bytes),
        ),
        cost_estimate=cost,
    )(lstm_output, w)
    return out


def attention_layer_ref(lstm_output, attn_weight):
    """Pure-JAX reference matching the PyTorch forward exactly (f32 math)."""
    x = lstm_output.astype(jnp.float32)
    w = attn_weight.astype(jnp.float32)
    scores = jnp.einsum("bth,oh->bto", x, w)          # (B, T, 1)
    weights = jax.nn.softmax(scores, axis=1)
    return jnp.sum(weights * x, axis=1).astype(lstm_output.dtype)   # (B, H)


if __name__ == "__main__":
    key = jax.random.PRNGKey(0)
    k_x, k_w = jax.random.split(key)

    B, T, H = 2, 8, 32
    lstm_output = jax.random.normal(k_x, (B, T, H), dtype=jnp.float32)
    # nn.Linear(hidden_size, 1, bias=False).weight has shape (1, hidden_size)
    bound = 1.0 / (H ** 0.5)
    attn_weight = jax.random.uniform(k_w, (1, H), dtype=jnp.float32,
                                     minval=-bound, maxval=bound)

    out = attention_layer(lstm_output, attn_weight)
    out = jax.block_until_ready(out)

    ref = attention_layer_ref(lstm_output, attn_weight)
    assert out.shape == (B, H)
    max_err = jnp.max(jnp.abs(out - ref))
    assert jnp.allclose(out, ref, atol=1e-4, rtol=1e-4), \
        f"mismatch vs reference (max err {max_err})"

    print("KERNEL_OK")
</pallas_src>

<mosaic_0001>
module attributes {stable_mosaic.version = 11 : i64} {
  func.func @_attention_kernel(%arg0: i32, %arg1: memref<2x8x32xf32, #tpu.memory_space<vmem>>, %arg2: memref<1x32xf32, #tpu.memory_space<vmem>>, %arg3: memref<2x32xf32, #tpu.memory_space<vmem>>) attributes {dimension_semantics = [#tpu.dimension_semantics<parallel>], iteration_bounds = array<i64: 1>, scalar_prefetch = 0 : i64, scratch_operands = 0 : i64, tpu.core_type = #tpu.core_type<tc>, window_params = [{transform_indices = @transform_0, window_bounds = array<i64: 2, 8, 32>}, {pipeline_mode = #tpu.pipeline_mode<synchronous>, transform_indices = @transform_1, window_bounds = array<i64: 1, 32>}, {transform_indices = @transform_2, window_bounds = array<i64: 2, 32>}]} {
    %c0 = arith.constant 0 : index
    %c0_0 = arith.constant 0 : index
    %0 = vector.load %arg2[%c0, %c0_0] : memref<1x32xf32, #tpu.memory_space<vmem>>, vector<1x32xf32>
    %1 = vector.shape_cast %0 : vector<1x32xf32> to vector<1x1x32xf32>
    %c0_1 = arith.constant 0 : index
    %c0_2 = arith.constant 0 : index
    %c0_3 = arith.constant 0 : index
    %2 = vector.load %arg1[%c0_1, %c0_2, %c0_3] : memref<2x8x32xf32, #tpu.memory_space<vmem>>, vector<2x8x32xf32>
    %3 = vector.broadcast %1 : vector<1x1x32xf32> to vector<2x8x32xf32>
    %4 = arith.mulf %2, %3 : vector<2x8x32xf32>
    %cst = arith.constant dense<0.000000e+00> : vector<2x8xf32>
    %5 = vector.multi_reduction <add>, %4, %cst [2] : vector<2x8x32xf32> to vector<2x8xf32>
    %6 = vector.shape_cast %5 : vector<2x8xf32> to vector<2x8x1xf32>
    %cst_4 = arith.constant dense<0xFF800000> : vector<2x1xf32>
    %7 = vector.multi_reduction <maximumf>, %6, %cst_4 [1] : vector<2x8x1xf32> to vector<2x1xf32>
    %8 = vector.shape_cast %7 : vector<2x1xf32> to vector<2x1x1xf32>
    %9 = vector.broadcast %8 : vector<2x1x1xf32> to vector<2x8x1xf32>
    %10 = arith.subf %6, %9 : vector<2x8x1xf32>
    %11 = math.exp %10 : vector<2x8x1xf32>
    %cst_5 = arith.constant dense<0.000000e+00> : vector<2x1xf32>
    %12 = vector.multi_reduction <add>, %11, %cst_5 [1] : vector<2x8x1xf32> to vector<2x1xf32>
    %13 = vector.shape_cast %12 : vector<2x1xf32> to vector<2x1x1xf32>
    %c0_6 = arith.constant 0 : index
    %c0_7 = arith.constant 0 : index
    %c0_8 = arith.constant 0 : index
    %14 = vector.load %arg1[%c0_6, %c0_7, %c0_8] : memref<2x8x32xf32, #tpu.memory_space<vmem>>, vector<2x8x32xf32>
    %15 = vector.broadcast %11 : vector<2x8x1xf32> to vector<2x8x32xf32>
    %16 = arith.mulf %14, %15 : vector<2x8x32xf32>
    %cst_9 = arith.constant dense<0.000000e+00> : vector<2x32xf32>
    %17 = vector.multi_reduction <add>, %16, %cst_9 [1] : vector<2x8x32xf32> to vector<2x32xf32>
    %18 = vector.shape_cast %13 : vector<2x1x1xf32> to vector<2x1xf32>
    %cst_10 = arith.constant 1.000000e+00 : f32
    %19 = vector.broadcast %cst_10 : f32 to vector<2x1xf32>
    %20 = arith.divf %19, %18 : vector<2x1xf32>
    %21 = vector.broadcast %20 : vector<2x1xf32> to vector<2x32xf32>
    %22 = arith.mulf %17, %21 : vector<2x32xf32>
    %c0_11 = arith.constant 0 : index
    %c0_12 = arith.constant 0 : index
    %23 = vector.load %arg3[%c0_11, %c0_12] : memref<2x32xf32, #tpu.memory_space<vmem>>, vector<2x32xf32>
    tpu.vector_store %arg3[%c0_11, %c0_12], %22 {strides = array<i32>} : memref<2x32xf32, #tpu.memory_space<vmem>>, vector<2x32xf32>,
    return
  }
  func.func @transform_0(%arg0: i32) -> (i32, i32, i32) {
    %c0_i32 = arith.constant 0 : i32
    %c0_i32_0 = arith.constant 0 : i32
    %c0_i32_1 = arith.constant 0 : i32
    return %arg0, %c0_i32, %c0_i32_0 : i32, i32, i32
  }
  func.func @transform_1(%arg0: i32) -> (i32, i32) {
    %c0_i32 = arith.constant 0 : i32
    %c0_i32_0 = arith.constant 0 : i32
    %c0_i32_1 = arith.constant 0 : i32
    return %c0_i32, %c0_i32_0 : i32, i32
  }
  func.func @transform_2(%arg0: i32) -> (i32, i32) {
    %c0_i32 = arith.constant 0 : i32
    %c0_i32_0 = arith.constant 0 : i32
    return %arg0, %c0_i32 : i32, i32
  }
}

</mosaic_0001>

<llo_original>
// kernel: tpu_custom_call.1
$region0: #{tpu_custom_call.1}
  #allocation0 [shape = 'u32[]', space=smem, size = 0x4, offset = 0x4, fixed_abs, tag = 'smem constant byte address 0x4 - core index']
  #allocation1 [shape = 'u32[144,128]{1,0:T(1,128)}', space=vmem, size = 0x12000, scoped, tag = 'internal scratch']
  %s0 = inlined_call_operand.hbm [shape: f32[2,8,32], index: 0, kind: input, shape index: {}]
  %s1 = inlined_call_operand.vmem [shape: f32[1,32], index: 1, kind: input, shape index: {}]
  %s2 = inlined_call_operand.hbm [shape: f32[2,32], index: 2, kind: output, shape index: {}]
  %s3 = sld [smem:[#allocation0]]
  $region22: #{tpu_custom_call.1} parent=0
    _
  %s5 = ssub.s32 1, %s3
  %s6 = scalar_select 0, %s5, %s3
  $region1: #{tpu_custom_call.1} parent=0
    #allocation2 [shape = 'u8[8192]{0}', space=vmem, size = 0x2000, scoped, tag = 'input window, operand 0, single buffered']
    #allocation3 [shape = 's32[1]{0}', space=sflag, size = 0x4, scoped, tag = 'scoped memory for tpu_custom_call.1']
    #allocation4 [shape = 's32[1]{0}', space=sflag, size = 0x4, scoped, tag = 'scoped memory for tpu_custom_call.1']
    #allocation5 [shape = 'u8[1024]{0}', space=vmem, size = 0x400, scoped, tag = 'output window, operand 0, single buffered']
    %7 = vsyncpa [#allocation3], 0
    %8 = vsyncpa [#allocation4], 0
    // Predicated region
    $region2: #{tpu_custom_call.1} parent=1 // pred_check
      _
    $region3: #{tpu_custom_call.1} parent=1 // pred_check_branch
      %10 = sbr.rel (0) target = $region5
    $region4: #{tpu_custom_call.1} parent=1 // pred_region
      %s12 = ssub.s32 256, 256
      %13 = vsyncadd [#allocation3], %s12
      %s14 = sshll.u32 [#allocation2], 4
      %s15 = int_to_ptr.vmem [resolvable:$true] %s14
      %20 = dma.hbm_to_vmem [thread:$0]  %s0, 256, %s15, [#allocation3], 128, 128, 8
    $region5: #{tpu_custom_call.1} parent=1 // pred_fallthru
      _
    // Predicated region
    $region6: #{tpu_custom_call.1} parent=1 // pred_check
      _
    $region7: #{tpu_custom_call.1} parent=1 // pred_check_branch
      %22 = sbr.rel (0) target = $region9
    $region8: #{tpu_custom_call.1} parent=1 // pred_region
      _
    $region9: #{tpu_custom_call.1} parent=1 // pred_fallthru
      _
    // Predicated region
    $region10: #{tpu_custom_call.1} parent=1 // pred_check
      _
    $region11: #{tpu_custom_call.1} parent=1 // pred_check_branch
      %24 = sbr.rel (0) target = $region13
    $region12: #{tpu_custom_call.1} parent=1 // pred_region
      %25 = dma.done [#allocation3], 256
    $region13: #{tpu_custom_call.1} parent=1 // pred_fallthru
      _
    %v26 = vld [vmem:[%s1] sm:$0x1]
    %v27 = vld [vmem:[#allocation2] sm:$0xff]
    %v28 = vld [vmem:[#allocation2 + $0x8] sm:$0xff]
    %v30 = vlaneseq
    %v31 = vshrl.u32 %v30, 7
    %v32 = vsub.s32 0, %v31
    %v33 = vrot.slane %v26, %v32
    %v35 = vmul.f32 %v27, %v33
    %v36 = vmul.f32 %v28, %v33
    %vm37 = vcmask 261120
    %v38 = vsel %vm37, %v35, 0.0
    %39 = vadd.xlane.f32.xlu0 %v38
    %v40 = vpop.xlane.xlu0 %39
    %v41 = vsel %vm37, %v36, 0.0
    %42 = vadd.xlane.f32.xlu0 %v41
    %v43 = vpop.xlane.xlu0 %42
    %v44 = vrot.slane %v40, 4
    %v45 = vmax.f32 %v40, %v44
    %v46 = vrot.slane %v45, 2
    %v47 = vmax.f32 %v45, %v46
    %v48 = vrot.slane %v47, 1
    %v49 = vmax.f32 %v47, %v48
    %v50 = vrot.slane %v43, 4
    %v51 = vmax.f32 %v43, %v50
    %v52 = vrot.slane %v51, 2
    %v53 = vmax.f32 %v51, %v52
    %v54 = vrot.slane %v53, 1
    %v55 = vmax.f32 %v53, %v54
    %v56 = vsub.f32 %v40, %v49
    %v57 = vsub.f32 %v43, %v55
    %v58 = vmul.f32 %v56, 1.442695
    %v59 = vpow.pop %v58
    %v60 = vmul.f32 %v57, 1.442695
    %v61 = vpow.pop %v60
    %v62 = vrot.slane %v59, 4
    %v63 = vadd.f32 %v59, %v62
    %v64 = vrot.slane %v63, 2
    %v65 = vadd.f32 %v63, %v64
    %v66 = vrot.slane %v65, 1
    %v67 = vadd.f32 %v65, %v66
    %v68 = vrot.slane %v61, 4
    %v69 = vadd.f32 %v61, %v68
    %v70 = vrot.slane %v69, 2
    %v71 = vadd.f32 %v69, %v70
    %v72 = vrot.slane %v71, 1
    %v73 = vadd.f32 %v71, %v72
    %v74 = vmul.f32 %v27, %v59
    %v75 = vmul.f32 %v28, %v61
    %v76 = vsel %vm37, %v74, 0.0
    %v77 = vrot.slane %v76, 4
    %v78 = vadd.f32 %v76, %v77
    %v79 = vrot.slane %v78, 2
    %v80 = vadd.f32 %v78, %v79
    %v81 = vrot.slane %v80, 1
    %v82 = vadd.f32 %v80, %v81
    %v83 = vsel %vm37, %v75, 0.0
    %v84 = vrot.slane %v83, 4
    %v85 = vadd.f32 %v83, %v84
    %v86 = vrot.slane %v85, 2
    %v87 = vadd.f32 %v85, %v86
    %v88 = vrot.slane %v87, 1
    %v89 = vadd.f32 %v87, %v88
    %v90 = vrcp.pop %v67
    %v91 = vmul.f32 1.0, %v90
    %v92 = vrcp.pop %v73
    %v93 = vmul.f32 1.0, %v92
    %v94 = vmul.f32 %v82, %v91
    %v95 = vmul.f32 %v89, %v93
    %vm98 = vcmask 1041409
    %v99 = vsel %vm98, %v95, %v94
    %vm101 = vcmask 254976
    %102 = vst.msk [vmem:[#allocation5] sm:$0x3] %vm101, %v99
    // Predicated region
    $region14: #{tpu_custom_call.1} parent=1 // pred_check
      _
    $region15: #{tpu_custom_call.1} parent=1 // pred_check_branch
      %104 = sbr.rel (0) target = $region17
    $region16: #{tpu_custom_call.1} parent=1 // pred_region
      %s106 = ssub.s32 32, 32
      %107 = vsyncadd [#allocation4], %s106
      %s109 = sshll.u32 [#allocation5], 4
      %s110 = int_to_ptr.vmem [resolvable:$true] %s109
      %112 = dma.vmem_to_hbm [thread:$0]  %s110, 32, %s2, [#allocation4]
    $region17: #{tpu_custom_call.1} parent=1 // pred_fallthru
      _
    // Predicated region
    $region18: #{tpu_custom_call.1} parent=1 // pred_check
      _
    $region19: #{tpu_custom_call.1} parent=1 // pred_check_branch
      %114 = sbr.rel (0) target = $region21
    $region20: #{tpu_custom_call.1} parent=1 // pred_region
      %115 = dma.done [#allocation4], 32
    $region21: #{tpu_custom_call.1} parent=1 // pred_fallthru
      _
    %116 = vsyncpa [#allocation3], 1
    %117 = vsyncpa [#allocation4], 1

</llo_original>
